<compile_context>
chip_gen: v5e
topology: v5e:2x2
jax: 0.10.0
libtpu: 0.0.40
codegen_flags: <defaults>
</compile_context>

<pallas_src>
import jax
import jax.numpy as jnp
from jax import lax
from jax.experimental import pallas as pl
from jax.experimental.pallas import tpu as pltpu


def _seg_head_kernel(xcol_ref, w1t_ref, b1_ref, w2t_ref, b2_ref, o_ref):
    """Fused 3x3 conv (as one im2col matmul) + bias + ReLU + 1x1 conv + bias.

    xcol_ref : (9*Cin, TP)   bf16  im2col'd input tile, pixels on the lane axis
    w1t_ref  : (Cmid, 9*Cin) bf16  transposed 3x3 conv weights
    b1_ref   : (Cmid, 1)     f32
    w2t_ref  : (Cout, Cmid)  bf16  transposed 1x1 conv weights
    b2_ref   : (Cout, 1)     f32
    o_ref    : (Cout, TP)    f32   lane-dense output tile
    """
    # Single MXU matmul, f32 accumulation (K = 9*Cin), lane-dense N = TP.
    h = jnp.dot(w1t_ref[...], xcol_ref[...], preferred_element_type=jnp.float32)
    h = jnp.maximum(h + b1_ref[...], 0.0)            # bias + ReLU in f32 (VPU)
    out = jnp.dot(w2t_ref[...], h.astype(jnp.bfloat16),
                  preferred_element_type=jnp.float32) + b2_ref[...]
    o_ref[...] = out.astype(o_ref.dtype)


def _im2col_channels_first(x_nchw):
    """(N, Cin, H, W) -> (9*Cin, N*H*W), rows ordered (dy, dx, cin)."""
    n, cin, h, w = x_nchw.shape
    xp = jnp.pad(x_nchw, ((0, 0), (0, 0), (1, 1), (1, 1)))
    taps = [xp[:, :, dy:dy + h, dx:dx + w] for dy in range(3) for dx in range(3)]
    xcol = jnp.stack(taps, axis=0)                   # (9, N, Cin, H, W)
    xcol = jnp.transpose(xcol, (0, 2, 1, 3, 4))      # (9, Cin, N, H, W)
    return xcol.reshape(9 * cin, n * h * w)


def seg_model_forward(x_nchw, params):
    """Synthetic segmentation model; NCHW in / NCHW out like the PyTorch model."""
    w1, b1, w2, b2 = params            # w1: (3,3,Cin,Cmid) HWIO, w2: (Cmid,Cout)
    n, cin, h, w = x_nchw.shape
    cmid, cout = w2.shape[0], w2.shape[1]
    p = n * h * w
    assert p % 128 == 0, "pixel count must be lane-aligned for this toy kernel"

    # Layout plumbing (wrapper side): im2col + channels-first transposed weights.
    xcol = _im2col_channels_first(x_nchw).astype(jnp.bfloat16)      # (36, P)
    w1t = w1.reshape(9 * cin, cmid).T.astype(jnp.bfloat16)          # (Cmid, 36)
    w2t = w2.T.astype(jnp.bfloat16)                                 # (Cout, Cmid)
    b1c = b1.reshape(cmid, 1).astype(jnp.float32)
    b2c = b2.reshape(cout, 1).astype(jnp.float32)

    # Pixel tile: lane-dense (multiple of 128); >1 grid step so v7x can shard.
    tile_p = 256 if (p % 256 == 0 and p > 256) else p

    out_cp = pl.pallas_call(
        _seg_head_kernel,
        out_shape=jax.ShapeDtypeStruct((cout, p), jnp.float32),
        grid_spec=pltpu.PrefetchScalarGridSpec(
            num_scalar_prefetch=0,
            grid=(p // tile_p,),
            in_specs=[
                pl.BlockSpec((9 * cin, tile_p), lambda i: (0, i)),
                pl.BlockSpec((cmid, 9 * cin), lambda i: (0, 0)),
                pl.BlockSpec((cmid, 1), lambda i: (0, 0)),
                pl.BlockSpec((cout, cmid), lambda i: (0, 0)),
                pl.BlockSpec((cout, 1), lambda i: (0, 0)),
            ],
            out_specs=pl.BlockSpec((cout, tile_p), lambda i: (0, i)),
        ),
        compiler_params=pltpu.CompilerParams(
            dimension_semantics=("parallel",)),
    )(xcol, w1t, b1c, w2t, b2c)

    # (Cout, N*H*W) -> NCHW (pure layout, wrapper side).
    return jnp.transpose(out_cp.reshape(cout, n, h, w), (1, 0, 2, 3))


class TrainingWrapper:
    """JAX/Pallas analogue of the PyTorch TrainingWrapper (forward-only)."""

    def __init__(self, model):
        # `.cuda()` in the original is device placement; implicit on TPU.
        self.model = model

    def __call__(self, x):
        return self.forward(x)

    def forward(self, x):
        return self.model(x)

    def predict(self, x):
        return self(x)["prediction"]

    def calculate_loss(self, batch, loss_func, propagate=True):
        pred = self(batch["input"])
        loss = loss_func(pred, batch["segmentation"])
        # TODO(synk): `loss.backward()` (autograd propagation) has no
        # forward-only Pallas equivalent here; gradients are omitted.
        return loss


def _make_params(key, cin, cmid, cout):
    k1, k2 = jax.random.split(key, 2)
    w1 = jax.random.normal(k1, (3, 3, cin, cmid), jnp.float32) / (3 * 3 * cin) ** 0.5
    b1 = jnp.full((cmid,), 0.01, jnp.float32)
    w2 = jax.random.normal(k2, (cmid, cout), jnp.float32) / cmid ** 0.5
    b2 = jnp.zeros((cout,), jnp.float32)
    return w1, b1, w2, b2


if __name__ == "__main__":
    key = jax.random.PRNGKey(0)
    kp, kx = jax.random.split(key, 2)

    N, Cin, H, W = 2, 4, 16, 16
    Cmid, Cout = 8, 3                        # 3 segmentation classes

    w1, b1, w2, b2 = _make_params(kp, Cin, Cmid, Cout)
    params = (w1, b1, w2, b2)

    # Inner model returns a dict with 'prediction', as TrainingWrapper.predict expects.
    model = lambda x: {"prediction": seg_model_forward(x, params)}
    wrapper = TrainingWrapper(model)

    x = jax.random.normal(kx, (N, Cin, H, W), jnp.float32)   # NCHW, like PyTorch

    pred = wrapper.predict(x)
    pred = jax.block_until_ready(pred)
    assert pred.shape == (N, Cout, H, W), pred.shape

    # Independent pure-JAX reference (NHWC conv path), mirroring the kernel's
    # bf16 operand rounding so the comparison isolates the conv/matmul math.
    x_r = x.astype(jnp.bfloat16).astype(jnp.float32)
    w1_r = w1.astype(jnp.bfloat16).astype(jnp.float32)
    w2_r = w2.astype(jnp.bfloat16).astype(jnp.float32)
    x_nhwc = jnp.transpose(x_r, (0, 2, 3, 1))
    ref_h = lax.conv_general_dilated(
        x_nhwc, w1_r, (1, 1), "SAME",
        dimension_numbers=("NHWC", "HWIO", "NHWC"),
        precision=lax.Precision.HIGHEST)
    ref_h = jnp.maximum(ref_h + b1.reshape(1, 1, 1, Cmid), 0.0)
    ref_h = ref_h.astype(jnp.bfloat16).astype(jnp.float32)   # kernel casts h to bf16
    ref = jnp.einsum("nhwc,cd->nhwd", ref_h, w2_r,
                     precision=lax.Precision.HIGHEST) + b2.reshape(1, 1, 1, Cout)
    ref = jnp.transpose(ref, (0, 3, 1, 2))

    max_err = float(jnp.max(jnp.abs(pred - ref)))
    assert jnp.allclose(pred, ref, rtol=5e-3, atol=5e-3), max_err
    print("KERNEL_OK")
</pallas_src>

<mosaic_0001>
module attributes {stable_mosaic.version = 11 : i64} {
  func.func @_seg_head_kernel(%arg0: i32, %arg1: memref<36x256xbf16, #tpu.memory_space<vmem>>, %arg2: memref<8x36xbf16, #tpu.memory_space<vmem>>, %arg3: memref<8x1xf32, #tpu.memory_space<vmem>>, %arg4: memref<3x8xbf16, #tpu.memory_space<vmem>>, %arg5: memref<3x1xf32, #tpu.memory_space<vmem>>, %arg6: memref<3x256xf32, #tpu.memory_space<vmem>>) attributes {dimension_semantics = [#tpu.dimension_semantics<parallel>], iteration_bounds = array<i64: 2>, scalar_prefetch = 0 : i64, scratch_operands = 0 : i64, tpu.core_type = #tpu.core_type<tc>, window_params = [{transform_indices = @transform_0, window_bounds = array<i64: 36, 256>}, {pipeline_mode = #tpu.pipeline_mode<synchronous>, transform_indices = @transform_1, window_bounds = array<i64: 8, 36>}, {pipeline_mode = #tpu.pipeline_mode<synchronous>, transform_indices = @transform_2, window_bounds = array<i64: 8, 1>}, {pipeline_mode = #tpu.pipeline_mode<synchronous>, transform_indices = @transform_3, window_bounds = array<i64: 3, 8>}, {pipeline_mode = #tpu.pipeline_mode<synchronous>, transform_indices = @transform_4, window_bounds = array<i64: 3, 1>}, {transform_indices = @transform_5, window_bounds = array<i64: 3, 256>}]} {
    %c0 = arith.constant 0 : index
    %c0_0 = arith.constant 0 : index
    %0 = vector.load %arg2[%c0, %c0_0] : memref<8x36xbf16, #tpu.memory_space<vmem>>, vector<8x36xbf16>
    %c0_1 = arith.constant 0 : index
    %c0_2 = arith.constant 0 : index
    %1 = vector.load %arg1[%c0_1, %c0_2] : memref<36x256xbf16, #tpu.memory_space<vmem>>, vector<36x256xbf16>
    %cst = arith.constant dense<0.000000e+00> : vector<8x256xf32>
    %2 = tpu.matmul %0, %1, %cst {dimension_numbers = #tpu.dot_dimension_numbers<[1], [0], [0], [1], [0, 0, 1, 1], [], []>} : vector<8x36xbf16>, vector<36x256xbf16>, vector<8x256xf32> -> vector<8x256xf32>
    %c0_3 = arith.constant 0 : index
    %c0_4 = arith.constant 0 : index
    %3 = vector.load %arg3[%c0_3, %c0_4] : memref<8x1xf32, #tpu.memory_space<vmem>>, vector<8x1xf32>
    %4 = vector.broadcast %3 : vector<8x1xf32> to vector<8x256xf32>
    %5 = arith.addf %2, %4 : vector<8x256xf32>
    %cst_5 = arith.constant 0.000000e+00 : f32
    %6 = vector.broadcast %cst_5 : f32 to vector<8x256xf32>
    %7 = arith.maximumf %5, %6 : vector<8x256xf32>
    %c0_6 = arith.constant 0 : index
    %c0_7 = arith.constant 0 : index
    %8 = vector.load %arg4[%c0_6, %c0_7] : memref<3x8xbf16, #tpu.memory_space<vmem>>, vector<3x8xbf16>
    %9 = arith.truncf %7 : vector<8x256xf32> to vector<8x256xbf16>
    %cst_8 = arith.constant dense<0.000000e+00> : vector<3x256xf32>
    %10 = tpu.matmul %8, %9, %cst_8 {dimension_numbers = #tpu.dot_dimension_numbers<[1], [0], [0], [1], [0, 0, 1, 1], [], []>} : vector<3x8xbf16>, vector<8x256xbf16>, vector<3x256xf32> -> vector<3x256xf32>
    %c0_9 = arith.constant 0 : index
    %c0_10 = arith.constant 0 : index
    %11 = vector.load %arg5[%c0_9, %c0_10] : memref<3x1xf32, #tpu.memory_space<vmem>>, vector<3x1xf32>
    %12 = vector.broadcast %11 : vector<3x1xf32> to vector<3x256xf32>
    %13 = arith.addf %10, %12 : vector<3x256xf32>
    %c0_11 = arith.constant 0 : index
    %c0_12 = arith.constant 0 : index
    %14 = vector.load %arg6[%c0_11, %c0_12] : memref<3x256xf32, #tpu.memory_space<vmem>>, vector<3x256xf32>
    tpu.vector_store %arg6[%c0_11, %c0_12], %13 {strides = array<i32>} : memref<3x256xf32, #tpu.memory_space<vmem>>, vector<3x256xf32>,
    return
  }
  func.func @transform_0(%arg0: i32) -> (i32, i32) {
    %c0_i32 = arith.constant 0 : i32
    %c0_i32_0 = arith.constant 0 : i32
    return %c0_i32, %arg0 : i32, i32
  }
  func.func @transform_1(%arg0: i32) -> (i32, i32) {
    %c0_i32 = arith.constant 0 : i32
    %c0_i32_0 = arith.constant 0 : i32
    %c0_i32_1 = arith.constant 0 : i32
    return %c0_i32, %c0_i32_0 : i32, i32
  }
  func.func @transform_2(%arg0: i32) -> (i32, i32) {
    %c0_i32 = arith.constant 0 : i32
    %c0_i32_0 = arith.constant 0 : i32
    %c0_i32_1 = arith.constant 0 : i32
    return %c0_i32, %c0_i32_0 : i32, i32
  }
  func.func @transform_3(%arg0: i32) -> (i32, i32) {
    %c0_i32 = arith.constant 0 : i32
    %c0_i32_0 = arith.constant 0 : i32
    %c0_i32_1 = arith.constant 0 : i32
    return %c0_i32, %c0_i32_0 : i32, i32
  }
  func.func @transform_4(%arg0: i32) -> (i32, i32) {
    %c0_i32 = arith.constant 0 : i32
    %c0_i32_0 = arith.constant 0 : i32
    %c0_i32_1 = arith.constant 0 : i32
    return %c0_i32, %c0_i32_0 : i32, i32
  }
  func.func @transform_5(%arg0: i32) -> (i32, i32) {
    %c0_i32 = arith.constant 0 : i32
    %c0_i32_0 = arith.constant 0 : i32
    return %c0_i32, %arg0 : i32, i32
  }
}

</mosaic_0001>

<llo_original>
// kernel: tpu_custom_call.1
$region0: #{tpu_custom_call.1}
  #allocation0 [shape = 'u32[]', space=smem, size = 0x4, offset = 0x4, fixed_abs, tag = 'smem constant byte address 0x4 - core index']
  #allocation1 [shape = 'u32[72,128]{1,0:T(1,128)}', space=vmem, size = 0x9000, scoped, tag = 'internal scratch']
  %s0 = inlined_call_operand.hbm [shape: bf16[36,512], index: 0, kind: input, shape index: {}]
  %s1 = inlined_call_operand.vmem [shape: bf16[8,36], index: 1, kind: input, shape index: {}]
  %s2 = inlined_call_operand.vmem [shape: f32[8,1], index: 2, kind: input, shape index: {}]
  %s3 = inlined_call_operand.vmem [shape: bf16[3,8], index: 3, kind: input, shape index: {}]
  %s4 = inlined_call_operand.vmem [shape: f32[3,1], index: 4, kind: input, shape index: {}]
  %s5 = inlined_call_operand.hbm [shape: f32[3,512], index: 5, kind: output, shape index: {}]
  %s6 = sld [smem:[#allocation0]]
  $region57: #{tpu_custom_call.1} parent=0
    _
  %s8 = ssub.s32 1, %s6
  %s9 = scalar_select 0, %s8, %s6
  $region1: #{tpu_custom_call.1} parent=0
    #allocation2 [shape = 'u8[40960]{0}', space=vmem, size = 0xa000, scoped, tag = 'input window, operand 0']
    #allocation3 [shape = 's32[2]{0}', space=sflag, size = 0x8, scoped, tag = 'scoped memory for tpu_custom_call.1']
    #allocation4 [shape = 's32[2]{0}', space=sflag, size = 0x8, scoped, tag = 'scoped memory for tpu_custom_call.1']
    #allocation5 [shape = 'u8[8192]{0}', space=vmem, size = 0x2000, scoped, tag = 'output window, operand 0']
    %10 = vsyncpa [#allocation3], 0
    %s11 = scalar_lea.sflag [#allocation3], 1
    %12 = vsyncpa %s11, 0
    %13 = vsyncpa [#allocation4], 0
    %s14 = scalar_lea.sflag [#allocation4], 1
    %15 = vsyncpa %s14, 0
    loop: start=0, step=1, limit=4
    $region2: #{tpu_custom_call.1} parent=1 // loop_pre_header
      _
    $region3: #{tpu_custom_call.1} parent=1 // loop_header
      %s17 = sphi 0, %s21
      %p18 = scmp.ge.s32.totalorder %s17, 4
      %s27 = sphi 0, %s29
      %s30 = sphi 0, %s27
      %s31 = sphi 0, %s30
      %s47 = sphi 0, %s31
      %s51 = sphi 0, %s51
      %s53 = sphi 0, %s51
      %s54 = sphi 0, %s53
      %s68 = sphi 0, %s54
      %s72 = sphi 0, %s72
      %s74 = sphi 0, %s72
      %s75 = sphi 0, %s74
      %s89 = sphi 0, %s75
      %s93 = sphi 0, %s93
      %s95 = sphi 0, %s93
      %s96 = sphi 0, %s95
      %s110 = sphi 0, %s96
      %s114 = sphi 0, %s114
      %s116 = sphi 0, %s114
      %s117 = sphi 0, %s116
      %s131 = sphi 0, %s117
      %s137 = sphi 0, %s139
      %s140 = sphi 0, %s137
      %s141 = sphi 0, %s140
      %s157 = sphi 0, %s141
    $region4: #{tpu_custom_call.1} parent=1 // loop_header_branch
      %20 = sbr.rel (%p18) target = $region8
    $region5: #{tpu_custom_call.1} parent=1 // loop_body
      %s22 = ssub.s32 %s17, 1
      %s23 = ssub.s32 %s17, 2
      %s24 = sadd.s32 %s17, 1
      %s25 = ssub.s32 %s17, %s24
      %p26 = scmp.eq.s32.totalorder %s25, 0
      %s28 = sadd.s32 %s27, 1
      %s29 = scalar_select %p26, %s27, %s28
      %p32 = pneg %p26
      %p33 = scmp.eq.s32.totalorder %s17, 1
      %p34 = por %p32, %p33
      %p35 = scmp.ne.s32.totalorder %s27, %s30
      %p36 = scmp.eq.s32.totalorder %s17, 0
      %p37 = por %p35, %p36
      %p38 = scmp.ne.s32.totalorder %s27, %s30
      %p39 = scmp.eq.s32.totalorder %s22, 1
      %p40 = por %p38, %p39
      %p41 = scmp.ne.s32.totalorder %s30, %s31
      %p42 = scmp.eq.s32.totalorder %s22, 0
      %p43 = por %p41, %p42
      %p44 = scmp.ne.s32.totalorder %s30, %s31
      %p45 = scmp.eq.s32.totalorder %s23, 1
      %p46 = por %p44, %p45
      %p48 = scmp.ne.s32.totalorder %s31, %s47
      %p49 = scmp.eq.s32.totalorder %s23, 0
      %p50 = por %p48, %p49
      %s52 = sadd.s32 %s51, 1
      %p55 = scmp.eq.s32.totalorder %s17, 1
      %p56 = scmp.ne.s32.totalorder %s51, %s53
      %p57 = scmp.eq.s32.totalorder %s17, 0
      %p58 = por %p56, %p57
      %p59 = scmp.ne.s32.totalorder %s51, %s53
      %p60 = scmp.eq.s32.totalorder %s22, 1
      %p61 = por %p59, %p60
      %p62 = scmp.ne.s32.totalorder %s53, %s54
      %p63 = scmp.eq.s32.totalorder %s22, 0
      %p64 = por %p62, %p63
      %p65 = scmp.ne.s32.totalorder %s53, %s54
      %p66 = scmp.eq.s32.totalorder %s23, 1
      %p67 = por %p65, %p66
      %p69 = scmp.ne.s32.totalorder %s54, %s68
      %p70 = scmp.eq.s32.totalorder %s23, 0
      %p71 = por %p69, %p70
      %s73 = sadd.s32 %s72, 1
      %p76 = scmp.eq.s32.totalorder %s17, 1
      %p77 = scmp.ne.s32.totalorder %s72, %s74
      %p78 = scmp.eq.s32.totalorder %s17, 0
      %p79 = por %p77, %p78
      %p80 = scmp.ne.s32.totalorder %s72, %s74
      %p81 = scmp.eq.s32.totalorder %s22, 1
      %p82 = por %p80, %p81
      %p83 = scmp.ne.s32.totalorder %s74, %s75
      %p84 = scmp.eq.s32.totalorder %s22, 0
      %p85 = por %p83, %p84
      %p86 = scmp.ne.s32.totalorder %s74, %s75
      %p87 = scmp.eq.s32.totalorder %s23, 1
      %p88 = por %p86, %p87
      %p90 = scmp.ne.s32.totalorder %s75, %s89
      %p91 = scmp.eq.s32.totalorder %s23, 0
      %p92 = por %p90, %p91
      %s94 = sadd.s32 %s93, 1
      %p97 = scmp.eq.s32.totalorder %s17, 1
      %p98 = scmp.ne.s32.totalorder %s93, %s95
      %p99 = scmp.eq.s32.totalorder %s17, 0
      %p100 = por %p98, %p99
      %p101 = scmp.ne.s32.totalorder %s93, %s95
      %p102 = scmp.eq.s32.totalorder %s22, 1
      %p103 = por %p101, %p102
      %p104 = scmp.ne.s32.totalorder %s95, %s96
      %p105 = scmp.eq.s32.totalorder %s22, 0
      %p106 = por %p104, %p105
      %p107 = scmp.ne.s32.totalorder %s95, %s96
      %p108 = scmp.eq.s32.totalorder %s23, 1
      %p109 = por %p107, %p108
      %p111 = scmp.ne.s32.totalorder %s96, %s110
      %p112 = scmp.eq.s32.totalorder %s23, 0
      %p113 = por %p111, %p112
      %s115 = sadd.s32 %s114, 1
      %p118 = scmp.eq.s32.totalorder %s17, 1
      %p119 = scmp.ne.s32.totalorder %s114, %s116
      %p120 = scmp.eq.s32.totalorder %s17, 0
      %p121 = por %p119, %p120
      %p122 = scmp.ne.s32.totalorder %s114, %s116
      %p123 = scmp.eq.s32.totalorder %s22, 1
      %p124 = por %p122, %p123
      %p125 = scmp.ne.s32.totalorder %s116, %s117
      %p126 = scmp.eq.s32.totalorder %s22, 0
      %p127 = por %p125, %p126
      %p128 = scmp.ne.s32.totalorder %s116, %s117
      %p129 = scmp.eq.s32.totalorder %s23, 1
      %p130 = por %p128, %p129
      %p132 = scmp.ne.s32.totalorder %s117, %s131
      %p133 = scmp.eq.s32.totalorder %s23, 0
      %p134 = por %p132, %p133
      %s135 = ssub.s32 %s17, %s24
      %p136 = scmp.eq.s32.totalorder %s135, 0
      %s138 = sadd.s32 %s137, 1
      %s139 = scalar_select %p136, %s137, %s138
      %p142 = pneg %p136
      %p143 = scmp.eq.s32.totalorder %s17, 1
      %p144 = por %p142, %p143
      %p145 = scmp.ne.s32.totalorder %s137, %s140
      %p146 = scmp.eq.s32.totalorder %s17, 0
      %p147 = por %p145, %p146
      %p148 = scmp.ne.s32.totalorder %s137, %s140
      %p149 = scmp.eq.s32.totalorder %s22, 1
      %p150 = por %p148, %p149
      %p151 = scmp.ne.s32.totalorder %s140, %s141
      %p152 = scmp.eq.s32.totalorder %s22, 0
      %p153 = por %p151, %p152
      %p154 = scmp.ne.s32.totalorder %s140, %s141
      %p155 = scmp.eq.s32.totalorder %s23, 1
      %p156 = por %p154, %p155
      %p158 = scmp.ne.s32.totalorder %s141, %s157
      %p159 = scmp.eq.s32.totalorder %s23, 0
      %p160 = por %p158, %p159
      %p161 = scmp.le.s32.totalorder 1, %s17
      %p162 = scmp.lt.s32.totalorder %s17, 3
      %p163 = pnand %p161, %p162
      %p164 = pneg %p163
      // Predicated region
      $region9: #{tpu_custom_call.1} parent=5 // pred_check
        _
      $region10: #{tpu_custom_call.1} parent=5 // pred_check_branch
        %166 = sbr.rel (%p163) target = $region12
      $region11: #{tpu_custom_call.1} parent=5 // pred_region
        %s167 = ssub.s32 %s17, 1
        // Predicated region
        $region13: #{tpu_custom_call.1} parent=11 // pred_check
          %p168 = pneg %p64
        $region14: #{tpu_custom_call.1} parent=11 // pred_check_branch
          %170 = sbr.rel (%p168) target = $region16
        $region15: #{tpu_custom_call.1} parent=11 // pred_region
          _
        $region16: #{tpu_custom_call.1} parent=11 // pred_fallthru
          _
        // Predicated region
        $region17: #{tpu_custom_call.1} parent=11 // pred_check
          %p171 = pneg %p85
        $region18: #{tpu_custom_call.1} parent=11 // pred_check_branch
          %173 = sbr.rel (%p171) target = $region20
        $region19: #{tpu_custom_call.1} parent=11 // pred_region
          _
        $region20: #{tpu_custom_call.1} parent=11 // pred_fallthru
          _
        // Predicated region
        $region21: #{tpu_custom_call.1} parent=11 // pred_check
          %p174 = pneg %p106
        $region22: #{tpu_custom_call.1} parent=11 // pred_check_branch
          %176 = sbr.rel (%p174) target = $region24
        $region23: #{tpu_custom_call.1} parent=11 // pred_region
          _
        $region24: #{tpu_custom_call.1} parent=11 // pred_fallthru
          _
        // Predicated region
        $region25: #{tpu_custom_call.1} parent=11 // pred_check
          %p177 = pneg %p127
        $region26: #{tpu_custom_call.1} parent=11 // pred_check_branch
          %179 = sbr.rel (%p177) target = $region28
        $region27: #{tpu_custom_call.1} parent=11 // pred_region
          _
        $region28: #{tpu_custom_call.1} parent=11 // pred_fallthru
          _
      $region12: #{tpu_custom_call.1} parent=5 // pred_fallthru
        _
      %p180 = scmp.lt.s32.totalorder %s17, 2
      // Predicated region
      $region29: #{tpu_custom_call.1} parent=5 // pred_check
        %p181 = pneg %p180
      $region30: #{tpu_custom_call.1} parent=5 // pred_check_branch
        %183 = sbr.rel (%p181) target = $region32
      $region31: #{tpu_custom_call.1} parent=5 // pred_region
        // Predicated region
        $region33: #{tpu_custom_call.1} parent=31 // pred_check
          %p184 = pneg %p37
        $region34: #{tpu_custom_call.1} parent=31 // pred_check_branch
          %186 = sbr.rel (%p184) target = $region36
        $region35: #{tpu_custom_call.1} parent=31 // pred_region
          %s187 = sand.u32 %s27, 1
          %s188 = scalar_lea.sflag [#allocation3], %s187
          %s189 = sand.u32 %s27, 1
          %s190 = smul.addr %s189, 40
          %s191 = scalar_lea.vmem [#allocation2], %s190
          %s192 = smul.u32 2, %s17
          %194 = vsyncadd %s188, 0
          %s195 = smul.addr %s192, 4
          %s196 = scalar_lea.hbm %s0, %s195
          %s197 = sshll.u32 %s196, 4
          %s198 = int_to_ptr.hbm [resolvable:$true] %s197
          %s199 = sshll.u32 %s191, 4
          %s200 = int_to_ptr.vmem [resolvable:$true] %s199
          %205 = dma.hbm_to_vmem [thread:$0]  %s198, 640, %s200, %s188, 256, 128, 8
        $region36: #{tpu_custom_call.1} parent=31 // pred_fallthru
          _
      $region32: #{tpu_custom_call.1} parent=5 // pred_fallthru
        _
      %p206 = scmp.le.s32.totalorder 1, %s17
      %p207 = scmp.lt.s32.totalorder %s17, 3
      %p208 = pnand %p206, %p207
      %p209 = pneg %p208
      // Predicated region
      $region37: #{tpu_custom_call.1} parent=5 // pred_check
        _
      $region38: #{tpu_custom_call.1} parent=5 // pred_check_branch
        %211 = sbr.rel (%p208) target = $region40
      $region39: #{tpu_custom_call.1} parent=5 // pred_region
        %s212 = ssub.s32 %s17, 1
        %s213 = sand.u32 %s30, 1
        %s214 = scalar_lea.sflag [#allocation3], %s213
        %s215 = sand.u32 %s30, 1
        %s216 = smul.addr %s215, 40
        %s217 = scalar_lea.vmem [#allocation2], %s216
        // Predicated region
        $region41: #{tpu_custom_call.1} parent=39 // pred_check
          %p218 = pneg %p43
        $region42: #{tpu_custom_call.1} parent=39 // pred_check_branch
          %220 = sbr.rel (%p218) target = $region44
        $region43: #{tpu_custom_call.1} parent=39 // pred_region
          %222 = dma.done %s214, 640
        $region44: #{tpu_custom_call.1} parent=39 // pred_fallthru
          _
        %s223 = sand.u32 %s30, 1
        %s224 = scalar_lea.sflag [#allocation3], %s223
        %s225 = sand.u32 %s30, 1
        %s226 = smul.addr %s225, 40
        %s227 = scalar_lea.vmem [#allocation2], %s226
        %p228 = pneg %p43
        %p229 = pneg %p40
        %p230 = pneg %p64
        %p231 = pneg %p61
        %p232 = pneg %p85
        %p233 = pneg %p82
        %p234 = pneg %p106
        %p235 = pneg %p103
        %p236 = pneg %p127
        %p237 = pneg %p124
        %p238 = pneg %p153
        %p239 = pneg %p150
        %s240 = sand.u32 %s140, 1
        %s241 = scalar_lea.sflag [#allocation4], %s240
        %s242 = sand.u32 %s140, 1
        %s243 = smul.addr %s242, 8
        %s244 = scalar_lea.vmem [#allocation5], %s243
        %s245 = smul.u32 2, %s22
        %s246 = smul.u32 2, %s22
        %v248 = vld [vmem:[%s1] sm:$0xf]
        %v249 = vld [vmem:[%s217] sm:$0xff]
        %v250 = vld [vmem:[%s217 + $0x8] sm:$0xff]
        %v251 = vld [vmem:[%s217 + $0x10] sm:$0xff]
        %v252 = vld [vmem:[%s217 + $0x18] sm:$0xff]
        %v253 = vld [vmem:[%s217 + $0x20] sm:$0x33]
        %v254 = vld [vmem:[%s2] sm:$0xff]
        %256 = vset.pattern.permute.xlu0 0
        %257 = vperm.xlu0 %256, %v254
        %v258 = vpop.permute.xlu0 %257
        %v265 = vunpack.c.l.b16 %v249
        %v266 = vunpack.c.h.b16 %v249
        %v267 = vunpack.c.l.b16 %v250
        %v268 = vunpack.c.h.b16 %v250
        %v269 = vunpack.c.l.b16 %v251
        %v270 = vunpack.c.h.b16 %v251
        %v271 = vunpack.c.l.b16 %v252
        %v272 = vunpack.c.h.b16 %v252
        %v273 = vunpack.c.l.b16 %v253
        %v274 = vunpack.c.h.b16 %v253
        %v275 = vpack.c.b16 %v267, %v265
        %v276 = vpack.c.b16 %v268, %v266
        %v277 = vpack.c.b16 %v271, %v269
        %v278 = vpack.c.b16 %v272, %v270
        %v279 = vpack.c.b16 %v273, %v273
        %v280 = vpack.c.b16 %v274, %v274
        %vm285 = vcmask 293888
        %v287 = vsel %vm285, %v248, 0
        %vm289 = vcmask 1041408
        %v291 = vsel %vm289, %v279, 0
        %v294 = vsel %vm289, %v280, 0
        %296 = vmatpush.bf16.msra.mxu0 0
        %297 = vmatpush.bf16.msra.mxu0 0
        %298 = vmatpush.bf16.msra.mxu0 0
        %299 = vmatpush.bf16.msra.mxu0 0
        %300 = vmatpush.bf16.msra.mxu0 0
        %301 = vmatpush.bf16.msra.mxu0 %v291
        %302 = vmatpush.bf16.msra.mxu0 %v277
        %303 = vmatpush.bf16.msra.mxu0 %v275
        %304 = vmatmul.bf16.gmra.mxu0 %v287
        %v305 = vpop.f32.mrf.mxu0
        %v306 = vadd.f32 %v258, %v305
        %v307 = vpop.f32.mrf.mxu0
        %308 = vdwg.mxu0
        %309 = vmatpush.bf16.msra.mxu0 0
        %310 = vmatpush.bf16.msra.mxu0 0
        %311 = vmatpush.bf16.msra.mxu0 0
        %312 = vmatpush.bf16.msra.mxu0 0
        %313 = vmatpush.bf16.msra.mxu0 0
        %314 = vmatpush.bf16.msra.mxu0 %v294
        %315 = vmatpush.bf16.msra.mxu0 %v278
        %316 = vmatpush.bf16.msra.mxu0 %v276
        %317 = vmatmul.bf16.gmra.mxu0 %v287
        %v318 = vpop.f32.mrf.mxu0
        %v319 = vadd.f32 %v258, %v318
        %v320 = vpop.f32.mrf.mxu0
        %321 = vdwg.mxu0
        %v322 = vmax.f32 %v306, 0.0
        %v323 = vmax.f32 %v319, 0.0
        %v324 = vld [vmem:[%s3] sm:$0x3]
        %v325 = vpack.c.bf16 %v322, %v322
        %v326 = vpack.c.bf16 %v323, %v323
        %v327 = vld [vmem:[%s4] sm:$0x7]
        %329 = vset.pattern.permute.xlu0 0
        %330 = vperm.xlu0 %329, %v327
        %v331 = vpop.permute.xlu0 %330
        %vm333 = vcmask 64512
        %v335 = vsel %vm333, %v324, 0
        %vm337 = vcmask 1043456
        %v339 = vsel %vm337, %v325, 0
        %v342 = vsel %vm337, %v326, 0
        %344 = vmatpush.bf16.msra.mxu0 0
        %345 = vmatpush.bf16.msra.mxu0 0
        %346 = vmatpush.bf16.msra.mxu0 0
        %347 = vmatpush.bf16.msra.mxu0 0
        %348 = vmatpush.bf16.msra.mxu0 0
        %349 = vmatpush.bf16.msra.mxu0 0
        %350 = vmatpush.bf16.msra.mxu0 0
        %351 = vmatpush.bf16.msra.mxu0 %v339
        %352 = vmatmul.bf16.gmra.mxu0 %v335
        %v353 = vpop.f32.mrf.mxu0
        %v354 = vadd.f32 %v331, %v353
        %v355 = vpop.f32.mrf.mxu0
        %356 = vdwg.mxu0
        %357 = vmatpush.bf16.msra.mxu0 0
        %358 = vmatpush.bf16.msra.mxu0 0
        %359 = vmatpush.bf16.msra.mxu0 0
        %360 = vmatpush.bf16.msra.mxu0 0
        %361 = vmatpush.bf16.msra.mxu0 0
        %362 = vmatpush.bf16.msra.mxu0 0
        %363 = vmatpush.bf16.msra.mxu0 0
        %364 = vmatpush.bf16.msra.mxu0 %v342
        %365 = vmatmul.bf16.gmra.mxu0 %v335
        %v366 = vpop.f32.mrf.mxu0
        %v367 = vadd.f32 %v331, %v366
        %v368 = vpop.f32.mrf.mxu0
        %369 = vdwg.mxu0
        %v372 = vrot.slane %v367, 4
        %v373 = vsel %vm337, %v354, %v372
        %375 = vst [vmem:[%s244] sm:$0x77] %v373
        %s376 = sand.u32 %s140, 1
        %s377 = scalar_lea.sflag [#allocation4], %s376
        %s378 = sand.u32 %s140, 1
        %s379 = smul.addr %s378, 8
        %s380 = scalar_lea.vmem [#allocation5], %s379
        // Predicated region
        $region45: #{tpu_custom_call.1} parent=39 // pred_check
          %p381 = pneg %p150
        $region46: #{tpu_custom_call.1} parent=39 // pred_check_branch
          %383 = sbr.rel (%p381) target = $region48
        $region47: #{tpu_custom_call.1} parent=39 // pred_region
          %s384 = smul.u32 2, %s22
          %386 = vsyncadd %s377, 0
          %s387 = smul.addr %s384, 4
          %s388 = scalar_lea.hbm %s5, %s387
          %s390 = sshll.u32 %s380, 4
          %s391 = int_to_ptr.vmem [resolvable:$true] %s390
          %s392 = sshll.u32 %s388, 4
          %s393 = int_to_ptr.hbm [resolvable:$true] %s392
          %395 = dma.vmem_to_hbm [thread:$0]  %s391, 128, %s393, %s377
        $region48: #{tpu_custom_call.1} parent=39 // pred_fallthru
          _
      $region40: #{tpu_custom_call.1} parent=5 // pred_fallthru
        _
      %p396 = scmp.le.s32.totalorder 2, %s17
      // Predicated region
      $region49: #{tpu_custom_call.1} parent=5 // pred_check
        %p397 = pneg %p396
      $region50: #{tpu_custom_call.1} parent=5 // pred_check_branch
        %399 = sbr.rel (%p397) target = $region52
      $region51: #{tpu_custom_call.1} parent=5 // pred_region
        %s400 = ssub.s32 %s17, 2
        // Predicated region
        $region53: #{tpu_custom_call.1} parent=51 // pred_check
          %p401 = pneg %p156
        $region54: #{tpu_custom_call.1} parent=51 // pred_check_branch
          %403 = sbr.rel (%p401) target = $region56
        $region55: #{tpu_custom_call.1} parent=51 // pred_region
          %s404 = sand.u32 %s141, 1
          %s405 = scalar_lea.sflag [#allocation4], %s404
          %s406 = sand.u32 %s141, 1
          %s407 = smul.addr %s406, 8
          %s408 = scalar_lea.vmem [#allocation5], %s407
          %410 = dma.done %s405, 128
        $region56: #{tpu_custom_call.1} parent=51 // pred_fallthru
          _
      $region52: #{tpu_custom_call.1} parent=5 // pred_fallthru
        _
    $region6: #{tpu_custom_call.1} parent=1 // loop_footer
      %s21 = sadd.s32 1, %s17
    $region7: #{tpu_custom_call.1} parent=1 // loop_footer_branch
      %16 = sbr.rel target = $region3
    $region8: #{tpu_custom_call.1} parent=1 // loop_exit
      _
    %411 = vsyncpa [#allocation3], 1
    %s412 = scalar_lea.sflag [#allocation3], 1
    %413 = vsyncpa %s412, 1
    %414 = vsyncpa [#allocation4], 1
    %s415 = scalar_lea.sflag [#allocation4], 1
    %416 = vsyncpa %s415, 1

</llo_original>
